<compile_context>
chip_gen: v6e
topology: v6e:2x2x1
jax: 0.10.0
libtpu: 0.0.40
codegen_flags: <defaults>
</compile_context>

<pallas_src>
import jax
import jax.numpy as jnp
from jax.experimental import pallas as pl
from jax.experimental.pallas import tpu as pltpu


def _round_up(n, m):
    return ((n + m - 1) // m) * m


def _encoder_kernel(xT_ref, w1t_ref, b1_ref, w2t_ref, b2_ref, oT_ref):
    # layer1: (hid_p, in_p) @ (in_p, tile_b) -> (hid_p, tile_b), f32 accumulate.
    h = jnp.dot(w1t_ref[...], xT_ref[...], preferred_element_type=jnp.float32)
    h = jnp.maximum(h + b1_ref[...], 0.0)          # bias-add / ReLU in f32
    # layer2: (lat_p, hid_p) @ (hid_p, tile_b) -> (lat_p, tile_b), f32 accumulate.
    o = jnp.dot(w2t_ref[...], h.astype(w2t_ref.dtype),
                preferred_element_type=jnp.float32)
    o = jnp.maximum(o + b2_ref[...], 0.0)
    oT_ref[...] = o                                 # lane-dense f32 store


def prepare_params(w1, b1, w2, b2, *, compute_dtype=jnp.float32):
    """One-time prep: transpose to (out,in), zero-pad feature dims, cast weights.

    w1: (input_size, hidden), w2: (hidden, latent), b1: (hidden,), b2: (latent,)
    (same math as PyTorch nn.Linear with W stored transposed).
    """
    input_size, hidden = w1.shape
    _, latent = w2.shape
    in_p = _round_up(input_size, 16)
    hid_p = _round_up(hidden, 16)
    lat_p = _round_up(latent, 8)

    w1t = jnp.zeros((hid_p, in_p), jnp.float32).at[:hidden, :input_size].set(w1.T)
    w2t = jnp.zeros((lat_p, hid_p), jnp.float32).at[:latent, :hidden].set(w2.T)
    b1p = jnp.zeros((hid_p, 1), jnp.float32).at[:hidden, 0].set(b1.reshape(-1))
    b2p = jnp.zeros((lat_p, 1), jnp.float32).at[:latent, 0].set(b2.reshape(-1))
    return (w1t.astype(compute_dtype), b1p, w2t.astype(compute_dtype), b2p, latent)


def encoder_forward(x, prepared, *, tile_b=1024, compute_dtype=jnp.float32):
    """x: (batch, input_size) f32 -> (batch, latent) f32 (PyTorch layout)."""
    w1t, b1p, w2t, b2p, latent = prepared
    lat_p, hid_p = w2t.shape
    _, in_p = w1t.shape
    batch, input_size = x.shape

    # Batch tile: multiple of 128 lanes; don't over-pad tiny batches.
    tile_b = max(128, min(tile_b, _round_up(batch, 128)))
    batch_p = _round_up(batch, tile_b)

    # Transposed, zero-padded input: (in_p, batch_p), batch on the lane axis.
    xT = jnp.zeros((in_p, batch_p), compute_dtype).at[:input_size, :batch].set(
        x.T.astype(compute_dtype))

    grid = (batch_p // tile_b,)
    oT = pl.pallas_call(
        _encoder_kernel,
        out_shape=jax.ShapeDtypeStruct((lat_p, batch_p), jnp.float32),
        grid_spec=pltpu.PrefetchScalarGridSpec(
            num_scalar_prefetch=0,
            grid=grid,
            in_specs=[
                pl.BlockSpec((in_p, tile_b), lambda i: (0, i)),   # x tile (pipelined)
                pl.BlockSpec((hid_p, in_p), lambda i: (0, 0)),    # W1ᵀ (resident)
                pl.BlockSpec((hid_p, 1), lambda i: (0, 0)),       # b1  (resident)
                pl.BlockSpec((lat_p, hid_p), lambda i: (0, 0)),   # W2ᵀ (resident)
                pl.BlockSpec((lat_p, 1), lambda i: (0, 0)),       # b2  (resident)
            ],
            out_specs=pl.BlockSpec((lat_p, tile_b), lambda i: (0, i)),
        ),
        compiler_params=pltpu.CompilerParams(
            dimension_semantics=("parallel",)),
    )(xT, w1t, b1p, w2t, b2p)

    # Back to PyTorch layout, dropping feature/batch padding.
    return oT[:latent, :batch].T


def init_params(key, input_size, hidden=9, latent=6):
    """Deterministic init mimicking PyTorch nn.Linear (uniform +-1/sqrt(fan_in))."""
    k1, k2, k3, k4 = jax.random.split(key, 4)
    bound1 = 1.0 / jnp.sqrt(input_size)
    bound2 = 1.0 / jnp.sqrt(hidden)
    w1 = jax.random.uniform(k1, (input_size, hidden), jnp.float32, -bound1, bound1)
    b1 = jax.random.uniform(k2, (hidden,), jnp.float32, -bound1, bound1)
    w2 = jax.random.uniform(k3, (hidden, latent), jnp.float32, -bound2, bound2)
    b2 = jax.random.uniform(k4, (latent,), jnp.float32, -bound2, bound2)
    return w1, b1, w2, b2


if __name__ == "__main__":
    key = jax.random.PRNGKey(0)
    kx, kp = jax.random.split(key)

    batch, input_size = 8, 16
    x = jax.random.normal(kx, (batch, input_size), jnp.float32)
    w1, b1, w2, b2 = init_params(kp, input_size)

    # Reference in plain JAX (same semantics as the PyTorch module, f32).
    ref = jnp.maximum(jnp.maximum(x @ w1 + b1[None, :], 0.0) @ w2 + b2[None, :], 0.0)

    # f32 path — exact module semantics.
    prepared = prepare_params(w1, b1, w2, b2, compute_dtype=jnp.float32)
    out = jax.block_until_ready(encoder_forward(x, prepared))
    assert out.shape == (batch, 6)
    assert jnp.allclose(out, ref, atol=1e-5, rtol=1e-5)

    # bf16 input/weight path (halves HBM traffic on v6e/v7x); f32 accumulate/epilogue.
    prepared_bf16 = prepare_params(w1, b1, w2, b2, compute_dtype=jnp.bfloat16)
    out_bf16 = jax.block_until_ready(
        encoder_forward(x, prepared_bf16, compute_dtype=jnp.bfloat16))
    assert out_bf16.shape == (batch, 6)
    assert jnp.allclose(out_bf16, ref, atol=5e-2, rtol=5e-2)

    print("KERNEL_OK")
</pallas_src>

<mosaic_0001>
module attributes {stable_mosaic.version = 11 : i64} {
  func.func @_encoder_kernel(%arg0: i32, %arg1: memref<16x128xf32, #tpu.memory_space<vmem>>, %arg2: memref<16x16xf32, #tpu.memory_space<vmem>>, %arg3: memref<16x1xf32, #tpu.memory_space<vmem>>, %arg4: memref<8x16xf32, #tpu.memory_space<vmem>>, %arg5: memref<8x1xf32, #tpu.memory_space<vmem>>, %arg6: memref<8x128xf32, #tpu.memory_space<vmem>>) attributes {dimension_semantics = [#tpu.dimension_semantics<parallel>], iteration_bounds = array<i64: 1>, scalar_prefetch = 0 : i64, scratch_operands = 0 : i64, tpu.core_type = #tpu.core_type<tc>, window_params = [{transform_indices = @transform_0, window_bounds = array<i64: 16, 128>}, {pipeline_mode = #tpu.pipeline_mode<synchronous>, transform_indices = @transform_1, window_bounds = array<i64: 16, 16>}, {pipeline_mode = #tpu.pipeline_mode<synchronous>, transform_indices = @transform_2, window_bounds = array<i64: 16, 1>}, {pipeline_mode = #tpu.pipeline_mode<synchronous>, transform_indices = @transform_3, window_bounds = array<i64: 8, 16>}, {pipeline_mode = #tpu.pipeline_mode<synchronous>, transform_indices = @transform_4, window_bounds = array<i64: 8, 1>}, {transform_indices = @transform_5, window_bounds = array<i64: 8, 128>}]} {
    %c0 = arith.constant 0 : index
    %c0_0 = arith.constant 0 : index
    %0 = vector.load %arg2[%c0, %c0_0] : memref<16x16xf32, #tpu.memory_space<vmem>>, vector<16x16xf32>
    %c0_1 = arith.constant 0 : index
    %c0_2 = arith.constant 0 : index
    %1 = vector.load %arg1[%c0_1, %c0_2] : memref<16x128xf32, #tpu.memory_space<vmem>>, vector<16x128xf32>
    %cst = arith.constant dense<0.000000e+00> : vector<16x128xf32>
    %2 = tpu.matmul %0, %1, %cst {dimension_numbers = #tpu.dot_dimension_numbers<[1], [0], [0], [1], [0, 0, 1, 1], [], []>} : vector<16x16xf32>, vector<16x128xf32>, vector<16x128xf32> -> vector<16x128xf32>
    %c0_3 = arith.constant 0 : index
    %c0_4 = arith.constant 0 : index
    %3 = vector.load %arg3[%c0_3, %c0_4] : memref<16x1xf32, #tpu.memory_space<vmem>>, vector<16x1xf32>
    %4 = vector.broadcast %3 : vector<16x1xf32> to vector<16x128xf32>
    %5 = arith.addf %2, %4 : vector<16x128xf32>
    %cst_5 = arith.constant 0.000000e+00 : f32
    %6 = vector.broadcast %cst_5 : f32 to vector<16x128xf32>
    %7 = arith.maximumf %5, %6 : vector<16x128xf32>
    %c0_6 = arith.constant 0 : index
    %c0_7 = arith.constant 0 : index
    %8 = vector.load %arg4[%c0_6, %c0_7] : memref<8x16xf32, #tpu.memory_space<vmem>>, vector<8x16xf32>
    %cst_8 = arith.constant dense<0.000000e+00> : vector<8x128xf32>
    %9 = tpu.matmul %8, %7, %cst_8 {dimension_numbers = #tpu.dot_dimension_numbers<[1], [0], [0], [1], [0, 0, 1, 1], [], []>} : vector<8x16xf32>, vector<16x128xf32>, vector<8x128xf32> -> vector<8x128xf32>
    %c0_9 = arith.constant 0 : index
    %c0_10 = arith.constant 0 : index
    %10 = vector.load %arg5[%c0_9, %c0_10] : memref<8x1xf32, #tpu.memory_space<vmem>>, vector<8x1xf32>
    %11 = vector.broadcast %10 : vector<8x1xf32> to vector<8x128xf32>
    %12 = arith.addf %9, %11 : vector<8x128xf32>
    %cst_11 = arith.constant 0.000000e+00 : f32
    %13 = vector.broadcast %cst_11 : f32 to vector<8x128xf32>
    %14 = arith.maximumf %12, %13 : vector<8x128xf32>
    %c0_12 = arith.constant 0 : index
    %c0_13 = arith.constant 0 : index
    %15 = vector.load %arg6[%c0_12, %c0_13] : memref<8x128xf32, #tpu.memory_space<vmem>>, vector<8x128xf32>
    tpu.vector_store %arg6[%c0_12, %c0_13], %14 {strides = array<i32>} : memref<8x128xf32, #tpu.memory_space<vmem>>, vector<8x128xf32>,
    return
  }
  func.func @transform_0(%arg0: i32) -> (i32, i32) {
    %c0_i32 = arith.constant 0 : i32
    %c0_i32_0 = arith.constant 0 : i32
    return %c0_i32, %arg0 : i32, i32
  }
  func.func @transform_1(%arg0: i32) -> (i32, i32) {
    %c0_i32 = arith.constant 0 : i32
    %c0_i32_0 = arith.constant 0 : i32
    %c0_i32_1 = arith.constant 0 : i32
    return %c0_i32, %c0_i32_0 : i32, i32
  }
  func.func @transform_2(%arg0: i32) -> (i32, i32) {
    %c0_i32 = arith.constant 0 : i32
    %c0_i32_0 = arith.constant 0 : i32
    %c0_i32_1 = arith.constant 0 : i32
    return %c0_i32, %c0_i32_0 : i32, i32
  }
  func.func @transform_3(%arg0: i32) -> (i32, i32) {
    %c0_i32 = arith.constant 0 : i32
    %c0_i32_0 = arith.constant 0 : i32
    %c0_i32_1 = arith.constant 0 : i32
    return %c0_i32, %c0_i32_0 : i32, i32
  }
  func.func @transform_4(%arg0: i32) -> (i32, i32) {
    %c0_i32 = arith.constant 0 : i32
    %c0_i32_0 = arith.constant 0 : i32
    %c0_i32_1 = arith.constant 0 : i32
    return %c0_i32, %c0_i32_0 : i32, i32
  }
  func.func @transform_5(%arg0: i32) -> (i32, i32) {
    %c0_i32 = arith.constant 0 : i32
    %c0_i32_0 = arith.constant 0 : i32
    return %c0_i32, %arg0 : i32, i32
  }
}

</mosaic_0001>

<llo_original>
// kernel: tpu_custom_call.1
$region0: #{tpu_custom_call.1}
  #allocation0 [shape = 'u32[]', space=smem, size = 0x4, offset = 0x4, fixed_abs, tag = 'smem constant byte address 0x4 - core index']
  #allocation1 [shape = 'u32[144,128]{1,0:T(1,128)}', space=vmem, size = 0x12000, scoped, tag = 'internal scratch']
  %s0 = inlined_call_operand.vmem [shape: f32[16,128], index: 0, kind: input, shape index: {}]
  %s1 = inlined_call_operand.hbm [shape: f32[16,16], index: 1, kind: input, shape index: {}]
  %s2 = inlined_call_operand.vmem [shape: f32[16,1], index: 2, kind: input, shape index: {}]
  %s3 = inlined_call_operand.vmem [shape: f32[8,16], index: 3, kind: input, shape index: {}]
  %s4 = inlined_call_operand.vmem [shape: f32[8,1], index: 4, kind: input, shape index: {}]
  %s5 = inlined_call_operand.hbm [shape: f32[8,128], index: 5, kind: output, shape index: {}]
  %s6 = sld [smem:[#allocation0]]
  $region34: #{tpu_custom_call.1} parent=0
    _
  %s8 = ssub.s32 1, %s6
  %s9 = scalar_select 0, %s8, %s6
  $region1: #{tpu_custom_call.1} parent=0
    #allocation2 [shape = 'u8[8192]{0}', space=vmem, size = 0x2000, scoped, tag = 'input window, operand 1, single buffered']
    #allocation3 [shape = 's32[1]{0}', space=sflag, size = 0x4, scoped, tag = 'scoped memory for tpu_custom_call.1']
    #allocation4 [shape = 's32[1]{0}', space=sflag, size = 0x4, scoped, tag = 'scoped memory for tpu_custom_call.1']
    #allocation5 [shape = 'u8[4096]{0}', space=vmem, size = 0x1000, scoped, tag = 'output window, operand 0, single buffered']
    %10 = vsyncpa [#allocation3], 0
    %11 = vsyncpa [#allocation4], 0
    // Predicated region
    $region2: #{tpu_custom_call.1} parent=1 // pred_check
      _
    $region3: #{tpu_custom_call.1} parent=1 // pred_check_branch
      %13 = sbr.rel (0) target = $region5
    $region4: #{tpu_custom_call.1} parent=1 // pred_region
      _
    $region5: #{tpu_custom_call.1} parent=1 // pred_fallthru
      _
    // Predicated region
    $region6: #{tpu_custom_call.1} parent=1 // pred_check
      _
    $region7: #{tpu_custom_call.1} parent=1 // pred_check_branch
      %15 = sbr.rel (0) target = $region9
    $region8: #{tpu_custom_call.1} parent=1 // pred_region
      %s17 = ssub.s32 256, 256
      %18 = vsyncadd [#allocation3], %s17
      %s19 = sshll.u32 [#allocation2], 4
      %s20 = int_to_ptr.vmem [resolvable:$true] %s19
      %25 = dma.hbm_to_vmem [thread:$0]  %s1, 256, %s20, [#allocation3], 128, 128, 8
    $region9: #{tpu_custom_call.1} parent=1 // pred_fallthru
      _
    // Predicated region
    $region10: #{tpu_custom_call.1} parent=1 // pred_check
      _
    $region11: #{tpu_custom_call.1} parent=1 // pred_check_branch
      %27 = sbr.rel (0) target = $region13
    $region12: #{tpu_custom_call.1} parent=1 // pred_region
      _
    $region13: #{tpu_custom_call.1} parent=1 // pred_fallthru
      _
    // Predicated region
    $region14: #{tpu_custom_call.1} parent=1 // pred_check
      _
    $region15: #{tpu_custom_call.1} parent=1 // pred_check_branch
      %29 = sbr.rel (0) target = $region17
    $region16: #{tpu_custom_call.1} parent=1 // pred_region
      _
    $region17: #{tpu_custom_call.1} parent=1 // pred_fallthru
      _
    // Predicated region
    $region18: #{tpu_custom_call.1} parent=1 // pred_check
      _
    $region19: #{tpu_custom_call.1} parent=1 // pred_check_branch
      %31 = sbr.rel (0) target = $region21
    $region20: #{tpu_custom_call.1} parent=1 // pred_region
      _
    $region21: #{tpu_custom_call.1} parent=1 // pred_fallthru
      _
    // Predicated region
    $region22: #{tpu_custom_call.1} parent=1 // pred_check
      _
    $region23: #{tpu_custom_call.1} parent=1 // pred_check_branch
      %33 = sbr.rel (0) target = $region25
    $region24: #{tpu_custom_call.1} parent=1 // pred_region
      %34 = dma.done [#allocation3], 256
    $region25: #{tpu_custom_call.1} parent=1 // pred_fallthru
      _
    %v35 = vld [vmem:[#allocation2] sm:$0xff]
    %v36 = vld [vmem:[#allocation2 + $0x8] sm:$0xff]
    %v37 = vld [vmem:[%s0] sm:$0xff]
    %v38 = vld [vmem:[%s0 + $0x8] sm:$0xff]
    %v39 = vld [vmem:[%s2] sm:$0xff]
    %v40 = vld [vmem:[%s2 + $0x8] sm:$0xff]
    %42 = vset.pattern.permute.xlu0 0
    %43 = vperm.xlu0 %42, %v39
    %v44 = vpop.permute.xlu0 %43
    %47 = vset.pattern.permute.xlu0 0
    %48 = vperm.xlu0 %47, %v40
    %v49 = vpop.permute.xlu0 %48
    %vm51 = vcmask 130048
    %v53 = vsel %vm51, %v35, 0
    %v56 = vsel %vm51, %v36, 0
    %58 = vmatprep.subr.mxu0 0.0
    %59 = vmatpush1.msra.mxu0 0.0
    %60 = vmatprep.subr.mxu0 0.0
    %61 = vmatpush1.msra.mxu0 0.0
    %62 = vmatprep.subr.mxu0 0.0
    %63 = vmatpush1.msra.mxu0 0.0
    %64 = vmatprep.subr.mxu0 0.0
    %65 = vmatpush1.msra.mxu0 0.0
    %66 = vmatprep.subr.mxu0 0.0
    %67 = vmatpush1.msra.mxu0 0.0
    %68 = vmatprep.subr.mxu0 0.0
    %69 = vmatpush1.msra.mxu0 0.0
    %70 = vmatprep.subr.mxu0 0.0
    %71 = vmatpush1.msra.mxu0 0.0
    %72 = vmatprep.subr.mxu0 0.0
    %73 = vmatpush1.msra.mxu0 0.0
    %74 = vmatprep.subr.mxu0 0.0
    %75 = vmatpush1.msra.mxu0 0.0
    %76 = vmatprep.subr.mxu0 0.0
    %77 = vmatpush1.msra.mxu0 0.0
    %78 = vmatprep.subr.mxu0 0.0
    %79 = vmatpush1.msra.mxu0 0.0
    %80 = vmatprep.subr.mxu0 0.0
    %81 = vmatpush1.msra.mxu0 0.0
    %82 = vmatprep.subr.mxu0 0.0
    %83 = vmatpush1.msra.mxu0 0.0
    %84 = vmatprep.subr.mxu0 0.0
    %85 = vmatpush1.msra.mxu0 0.0
    %86 = vmatprep.subr.mxu0 0.0
    %87 = vmatpush1.msra.mxu0 %v38
    %88 = vmatprep.subr.mxu0 0.0
    %89 = vmatpush1.msra.mxu0 %v37
    %90 = vmatprep.subr.mxu0 0.0
    %91 = vmatpush2.msra.mxu0 0.0
    %92 = vmatprep.subr.mxu0 0.0
    %93 = vmatpush2.msra.mxu0 0.0
    %94 = vmatprep.subr.mxu0 0.0
    %95 = vmatpush2.msra.mxu0 0.0
    %96 = vmatprep.subr.mxu0 0.0
    %97 = vmatpush2.msra.mxu0 0.0
    %98 = vmatprep.subr.mxu0 0.0
    %99 = vmatpush2.msra.mxu0 0.0
    %100 = vmatprep.subr.mxu0 0.0
    %101 = vmatpush2.msra.mxu0 0.0
    %102 = vmatprep.subr.mxu0 0.0
    %103 = vmatpush2.msra.mxu0 0.0
    %104 = vmatprep.subr.mxu0 0.0
    %105 = vmatpush2.msra.mxu0 0.0
    %106 = vmatprep.subr.mxu0 0.0
    %107 = vmatpush2.msra.mxu0 0.0
    %108 = vmatprep.subr.mxu0 0.0
    %109 = vmatpush2.msra.mxu0 0.0
    %110 = vmatprep.subr.mxu0 0.0
    %111 = vmatpush2.msra.mxu0 0.0
    %112 = vmatprep.subr.mxu0 0.0
    %113 = vmatpush2.msra.mxu0 0.0
    %114 = vmatprep.subr.mxu0 0.0
    %115 = vmatpush2.msra.mxu0 0.0
    %116 = vmatprep.subr.mxu0 0.0
    %117 = vmatpush2.msra.mxu0 0.0
    %118 = vmatprep.subr.mxu0 0.0
    %119 = vmatpush2.msra.mxu0 0.0
    %120 = vmatprep.subr.mxu0 0.0
    %121 = vmatpush2.msra.mxu0 0.0
    %122 = vmatprep.mubr.f32.mxu0 0.0
    %123 = vmatmul.mubr.f32.gmra.mxu0 %v53
    %v124 = vpop.f32.mrf.mxu0
    %v125 = vadd.f32 %v44, %v124
    %v126 = vpop.f32.mrf.mxu0
    %127 = vmatprep.mubr.f32.mxu0 0.0
    %128 = vmatmul.mubr.f32.gmra.mxu0 %v56
    %v129 = vpop.f32.mrf.mxu0
    %v130 = vadd.f32 %v49, %v129
    %v131 = vpop.f32.mrf.mxu0
    %132 = vdwg.mxu0
    %v133 = vmax.f32 %v125, 0.0
    %v134 = vmax.f32 %v130, 0.0
    %v135 = vld [vmem:[%s3] sm:$0xff]
    %v136 = vld [vmem:[%s4] sm:$0xff]
    %138 = vset.pattern.permute.xlu0 0
    %139 = vperm.xlu0 %138, %v136
    %v140 = vpop.permute.xlu0 %139
    %v143 = vsel %vm51, %v135, 0
    %145 = vmatprep.subr.mxu0 0.0
    %146 = vmatpush1.msra.mxu0 0.0
    %147 = vmatprep.subr.mxu0 0.0
    %148 = vmatpush1.msra.mxu0 0.0
    %149 = vmatprep.subr.mxu0 0.0
    %150 = vmatpush1.msra.mxu0 0.0
    %151 = vmatprep.subr.mxu0 0.0
    %152 = vmatpush1.msra.mxu0 0.0
    %153 = vmatprep.subr.mxu0 0.0
    %154 = vmatpush1.msra.mxu0 0.0
    %155 = vmatprep.subr.mxu0 0.0
    %156 = vmatpush1.msra.mxu0 0.0
    %157 = vmatprep.subr.mxu0 0.0
    %158 = vmatpush1.msra.mxu0 0.0
    %159 = vmatprep.subr.mxu0 0.0
    %160 = vmatpush1.msra.mxu0 0.0
    %161 = vmatprep.subr.mxu0 0.0
    %162 = vmatpush1.msra.mxu0 0.0
    %163 = vmatprep.subr.mxu0 0.0
    %164 = vmatpush1.msra.mxu0 0.0
    %165 = vmatprep.subr.mxu0 0.0
    %166 = vmatpush1.msra.mxu0 0.0
    %167 = vmatprep.subr.mxu0 0.0
    %168 = vmatpush1.msra.mxu0 0.0
    %169 = vmatprep.subr.mxu0 0.0
    %170 = vmatpush1.msra.mxu0 0.0
    %171 = vmatprep.subr.mxu0 0.0
    %172 = vmatpush1.msra.mxu0 0.0
    %173 = vmatprep.subr.mxu0 0.0
    %174 = vmatpush1.msra.mxu0 %v134
    %175 = vmatprep.subr.mxu0 0.0
    %176 = vmatpush1.msra.mxu0 %v133
    %177 = vmatprep.subr.mxu0 0.0
    %178 = vmatpush2.msra.mxu0 0.0
    %179 = vmatprep.subr.mxu0 0.0
    %180 = vmatpush2.msra.mxu0 0.0
    %181 = vmatprep.subr.mxu0 0.0
    %182 = vmatpush2.msra.mxu0 0.0
    %183 = vmatprep.subr.mxu0 0.0
    %184 = vmatpush2.msra.mxu0 0.0
    %185 = vmatprep.subr.mxu0 0.0
    %186 = vmatpush2.msra.mxu0 0.0
    %187 = vmatprep.subr.mxu0 0.0
    %188 = vmatpush2.msra.mxu0 0.0
    %189 = vmatprep.subr.mxu0 0.0
    %190 = vmatpush2.msra.mxu0 0.0
    %191 = vmatprep.subr.mxu0 0.0
    %192 = vmatpush2.msra.mxu0 0.0
    %193 = vmatprep.subr.mxu0 0.0
    %194 = vmatpush2.msra.mxu0 0.0
    %195 = vmatprep.subr.mxu0 0.0
    %196 = vmatpush2.msra.mxu0 0.0
    %197 = vmatprep.subr.mxu0 0.0
    %198 = vmatpush2.msra.mxu0 0.0
    %199 = vmatprep.subr.mxu0 0.0
    %200 = vmatpush2.msra.mxu0 0.0
    %201 = vmatprep.subr.mxu0 0.0
    %202 = vmatpush2.msra.mxu0 0.0
    %203 = vmatprep.subr.mxu0 0.0
    %204 = vmatpush2.msra.mxu0 0.0
    %205 = vmatprep.subr.mxu0 0.0
    %206 = vmatpush2.msra.mxu0 0.0
    %207 = vmatprep.subr.mxu0 0.0
    %208 = vmatpush2.msra.mxu0 0.0
    %209 = vmatprep.mubr.f32.mxu0 0.0
    %210 = vmatmul.mubr.f32.gmra.mxu0 %v143
    %v211 = vpop.f32.mrf.mxu0
    %v212 = vadd.f32 %v140, %v211
    %v213 = vpop.f32.mrf.mxu0
    %214 = vdwg.mxu0
    %v215 = vmax.f32 %v212, 0.0
    %216 = vst [vmem:[#allocation5] sm:$0xff] %v215
    // Predicated region
    $region26: #{tpu_custom_call.1} parent=1 // pred_check
      _
    $region27: #{tpu_custom_call.1} parent=1 // pred_check_branch
      %218 = sbr.rel (0) target = $region29
    $region28: #{tpu_custom_call.1} parent=1 // pred_region
      %s220 = ssub.s32 128, 128
      %221 = vsyncadd [#allocation4], %s220
      %s223 = sshll.u32 [#allocation5], 4
      %s224 = int_to_ptr.vmem [resolvable:$true] %s223
      %226 = dma.vmem_to_hbm [thread:$0]  %s224, 128, %s5, [#allocation4]
    $region29: #{tpu_custom_call.1} parent=1 // pred_fallthru
      _
    // Predicated region
    $region30: #{tpu_custom_call.1} parent=1 // pred_check
      _
    $region31: #{tpu_custom_call.1} parent=1 // pred_check_branch
      %228 = sbr.rel (0) target = $region33
    $region32: #{tpu_custom_call.1} parent=1 // pred_region
      %229 = dma.done [#allocation4], 128
    $region33: #{tpu_custom_call.1} parent=1 // pred_fallthru
      _
    %230 = vsyncpa [#allocation3], 1
    %231 = vsyncpa [#allocation4], 1

</llo_original>
